<compile_context>
chip_gen: v7x
topology: tpu7x:2x2x1
jax: 0.10.0
libtpu: 0.0.40
codegen_flags: <defaults>
</compile_context>

<pallas_src>
import jax
import jax.numpy as jnp
from jax.experimental import pallas as pl
from jax.experimental.pallas import tpu as pltpu

_MIB = 1024 * 1024


def _sublane_packing(*dtypes):
    """Sublane packing factor for the narrowest input dtype (f32->8, bf16->16, i8->32)."""
    pack = 8
    for dt in dtypes:
        itemsize = max(1, jnp.dtype(dt).itemsize)
        pack = max(pack, 32 // itemsize if itemsize <= 4 else 8)
    return pack


def _vmem_capacity_bytes():
    try:
        return int(pltpu.get_tpu_info().vmem_capacity_bytes)
    except Exception:
        return 64 * _MIB  # conservative (v7x) default if the query is unavailable


def _largest_divisor_leq(n, cap, multiple_of):
    """Largest d with n % d == 0, d <= cap, d % multiple_of == 0 (or None)."""
    cap = min(n, cap)
    if cap < multiple_of:
        return None
    start = (cap // multiple_of) * multiple_of
    for d in range(start, 0, -multiple_of):
        if n % d == 0:
            return d
    return None


def _fcn_cls_loss_kernel(invar_ref, outvar_ref, w_ref, partial_ref):
    x = invar_ref[...].astype(jnp.float32)   # (TB, TN) logits
    y = outvar_ref[...].astype(jnp.float32)  # (TB, TN) targets
    w = w_ref[...].astype(jnp.float32)       # (1,  TN) pixel weights

    # Numerically-stable BCEWithLogitsLoss (reduction='none'):
    #   loss = max(x, 0) - x*y + log1p(exp(-|x|))
    pixel_loss = jnp.maximum(x, 0.0) - x * y + jnp.log1p(jnp.exp(-jnp.abs(x)))
    weighted = pixel_loss * w  # weights broadcast over the batch sub-axis

    # One scalar partial per multi-MiB tile; cross-tile reduce + mean
    # normalization happen outside the kernel (better precision, no serial
    # read-modify-write chain across grid steps).
    partial_ref[0, 0] = jnp.sum(weighted)


def fcn_classification_loss(invar, outvar, pixel_weights=None,
                            block_byte_budget=None):
    """Weighted BCE-with-logits loss, mean-reduced.

    invar/outvar: [B, H, W]; pixel_weights: [1, H, W] (optional).
    bf16 inputs are encouraged at the call site: the kernel is HBM-bandwidth
    bound and casts to f32 internally, so bf16 halves wall-clock.
    """
    B, H, W = invar.shape
    assert outvar.shape == (B, H, W)
    if pixel_weights is None:
        pixel_weights = jnp.ones((1, H, W), dtype=invar.dtype)
    assert pixel_weights.shape == (1, H, W)

    N = H * W
    invar_f = invar.reshape(B, N)            # free re-view in XLA
    outvar_f = outvar.reshape(B, N)
    weights_f = pixel_weights.reshape(1, N)

    in_bytes = jnp.dtype(invar.dtype).itemsize
    out_bytes = jnp.dtype(outvar.dtype).itemsize
    w_bytes = jnp.dtype(pixel_weights.dtype).itemsize
    packing = _sublane_packing(invar.dtype, outvar.dtype)

    # --- generation-aware block budget & VMEM cap ----------------------------
    vmem_cap = _vmem_capacity_bytes()
    if block_byte_budget is None:
        # Bigger blocks where VMEM is plentiful (v5e/v6e: 128 MiB physical),
        # smaller on v7x (64 MiB physical, but 3.2 TB/s HBM so >=4 MiB already
        # makes the ~0.35 us/step overhead negligible).
        block_byte_budget = 6 * _MIB if vmem_cap >= 96 * _MIB else 4 * _MIB

    # --- choose tile sizes (TB, TN) for the flattened [B, N] arrays ----------
    max_in_bytes = max(in_bytes, out_bytes)
    elems_budget = max(128, block_byte_budget // max_in_bytes)

    if N * max_in_bytes <= block_byte_budget:
        TN = N                                   # whole flat axis fits
    elif N % 128 == 0:
        TN = _largest_divisor_leq(N, elems_budget, multiple_of=128) or N
    else:
        # No lane-aligned divisor: keep the full (always legal) flat axis and
        # rely on the scoped-VMEM limit below.
        TN = N

    rows_budget = max(1, elems_budget // TN)
    if rows_budget >= B:
        TB = B
    else:
        TB = _largest_divisor_leq(B, rows_budget, multiple_of=packing) or B

    nn, nb = N // TN, B // TB

    # --- scoped-VMEM limit: cover the double-buffered blocks, cap at 75% of
    #     physical VMEM (never exceeds v7x's 64 MiB) -------------------------
    needed = (2 * TB * TN * (in_bytes + out_bytes)   # 2 streamed inputs x 2 buffers
              + 2 * TN * w_bytes                     # weights block x 2 buffers
              + 2 * _MIB)                            # headroom for compiler scratch
    vmem_limit_bytes = min(int(0.75 * vmem_cap), max(needed, 32 * _MIB))
    # TODO(synk): if `needed` ever exceeds 75% of physical VMEM (huge H*W with
    # no 128-aligned divisor), re-tile with masked partial blocks instead.

    cost = pl.CostEstimate(
        flops=6 * B * N,
        transcendentals=2 * B * N,  # exp + log1p per element
        bytes_accessed=B * N * (in_bytes + out_bytes) + N * w_bytes + nn * nb * 4,
    )

    partials = pl.pallas_call(
        _fcn_cls_loss_kernel,
        out_shape=jax.ShapeDtypeStruct((nn, nb), jnp.float32),
        grid_spec=pltpu.PrefetchScalarGridSpec(
            num_scalar_prefetch=0,
            # Flat-axis tile outer, batch tile inner: the pixel-weights block
            # index only depends on the outer axis, so it is not re-fetched on
            # every batch step.
            grid=(nn, nb),
            in_specs=[
                pl.BlockSpec((TB, TN), lambda n, b: (b, n)),   # invar
                pl.BlockSpec((TB, TN), lambda n, b: (b, n)),   # outvar
                pl.BlockSpec((1, TN), lambda n, b: (0, n)),    # pixel weights
            ],
            out_specs=pl.BlockSpec((1, 1), lambda n, b: (n, b),
                                   memory_space=pltpu.SMEM),
        ),
        compiler_params=pltpu.CompilerParams(
            # Each program writes its own output slot -> fully parallel grid
            # (v7x megacore can shard it; harmless on single-TC v5e/v6e).
            dimension_semantics=("parallel", "parallel"),
            vmem_limit_bytes=vmem_limit_bytes,
        ),
        cost_estimate=cost,
    )(invar_f, outvar_f, weights_f)

    total_elems = jnp.float32(B) * jnp.float32(N)
    return jnp.sum(partials) / total_elems


def _reference_loss(invar, outvar, pixel_weights):
    x = invar.astype(jnp.float32)
    y = outvar.astype(jnp.float32)
    w = pixel_weights.astype(jnp.float32)
    pixel_loss = jnp.maximum(x, 0.0) - x * y + jnp.log1p(jnp.exp(-jnp.abs(x)))
    return (pixel_loss * w).mean()


if __name__ == "__main__":
    key = jax.random.PRNGKey(0)
    k1, k2, k3 = jax.random.split(key, 3)

    # --- small f32 case (single tile, grid=(1,1)) ----------------------------
    B, H, W = 2, 16, 16
    invar = jax.random.normal(k1, (B, H, W), dtype=jnp.float32)              # logits
    outvar = (jax.random.uniform(k2, (B, H, W)) > 0.5).astype(jnp.float32)   # targets
    pixel_weights = 0.5 + jax.random.uniform(k3, (1, H, W), dtype=jnp.float32)

    loss = jax.block_until_ready(fcn_classification_loss(invar, outvar, pixel_weights))
    ref = _reference_loss(invar, outvar, pixel_weights)
    assert jnp.allclose(loss, ref, atol=1e-5, rtol=1e-5), (loss, ref)

    # --- no pixel weights (module's pixel_weights=None branch) ---------------
    loss_nw = jax.block_until_ready(fcn_classification_loss(invar, outvar))
    ref_nw = _reference_loss(invar, outvar, jnp.ones((1, H, W), jnp.float32))
    assert jnp.allclose(loss_nw, ref_nw, atol=1e-5, rtol=1e-5), (loss_nw, ref_nw)

    # --- bf16 inputs (halved HBM traffic; f32 math inside the kernel) --------
    loss_bf16 = jax.block_until_ready(
        fcn_classification_loss(invar.astype(jnp.bfloat16),
                                outvar.astype(jnp.bfloat16),
                                pixel_weights.astype(jnp.bfloat16)))
    ref_bf16 = _reference_loss(invar.astype(jnp.bfloat16),
                               outvar.astype(jnp.bfloat16),
                               pixel_weights.astype(jnp.bfloat16))
    assert jnp.allclose(loss_bf16, ref_bf16, atol=1e-4, rtol=1e-4), (loss_bf16, ref_bf16)

    # --- force flat-axis tiling (grid over N) ---------------------------------
    k4, k5, k6 = jax.random.split(jax.random.PRNGKey(1), 3)
    B2, H2, W2 = 2, 16, 256   # N = 4096, budget forces TN = 2048 -> grid (2, 1)
    invar2 = jax.random.normal(k4, (B2, H2, W2), dtype=jnp.float32)
    outvar2 = (jax.random.uniform(k5, (B2, H2, W2)) > 0.5).astype(jnp.float32)
    weights2 = 0.5 + jax.random.uniform(k6, (1, H2, W2), dtype=jnp.float32)
    loss2 = jax.block_until_ready(
        fcn_classification_loss(invar2, outvar2, weights2, block_byte_budget=8192))
    ref2 = _reference_loss(invar2, outvar2, weights2)
    assert jnp.allclose(loss2, ref2, atol=1e-5, rtol=1e-5), (loss2, ref2)

    # --- force batch tiling (grid over B, weights reused across batch steps) --
    k7, k8, k9 = jax.random.split(jax.random.PRNGKey(2), 3)
    B3, H3, W3 = 16, 16, 128  # N = 2048, budget forces TB = 8 -> grid (1, 2)
    invar3 = jax.random.normal(k7, (B3, H3, W3), dtype=jnp.float32)
    outvar3 = (jax.random.uniform(k8, (B3, H3, W3)) > 0.5).astype(jnp.float32)
    weights3 = 0.5 + jax.random.uniform(k9, (1, H3, W3), dtype=jnp.float32)
    loss3 = jax.block_until_ready(
        fcn_classification_loss(invar3, outvar3, weights3, block_byte_budget=64 * 1024))
    ref3 = _reference_loss(invar3, outvar3, weights3)
    assert jnp.allclose(loss3, ref3, atol=1e-5, rtol=1e-5), (loss3, ref3)

    print("KERNEL_OK")
</pallas_src>

<mosaic_0001>
module attributes {stable_mosaic.version = 11 : i64} {
  func.func @_fcn_cls_loss_kernel(%arg0: i32, %arg1: i32, %arg2: memref<2x256xf32, #tpu.memory_space<vmem>>, %arg3: memref<2x256xf32, #tpu.memory_space<vmem>>, %arg4: memref<1x256xf32, #tpu.memory_space<vmem>>, %arg5: memref<1x1xf32, #tpu.memory_space<smem>>) attributes {dimension_semantics = [#tpu.dimension_semantics<parallel>, #tpu.dimension_semantics<parallel>], iteration_bounds = array<i64: 1, 1>, scalar_prefetch = 0 : i64, scratch_operands = 0 : i64, tpu.core_type = #tpu.core_type<tc>, window_params = [{transform_indices = @transform_0, window_bounds = array<i64: 2, 256>}, {transform_indices = @transform_1, window_bounds = array<i64: 2, 256>}, {transform_indices = @transform_2, window_bounds = array<i64: 1, 256>}, {transform_indices = @transform_3, window_bounds = array<i64: 1, 1>}]} {
    %c0 = arith.constant 0 : index
    %c0_0 = arith.constant 0 : index
    %0 = vector.load %arg2[%c0, %c0_0] : memref<2x256xf32, #tpu.memory_space<vmem>>, vector<2x256xf32>
    %c0_1 = arith.constant 0 : index
    %c0_2 = arith.constant 0 : index
    %1 = vector.load %arg3[%c0_1, %c0_2] : memref<2x256xf32, #tpu.memory_space<vmem>>, vector<2x256xf32>
    %c0_3 = arith.constant 0 : index
    %c0_4 = arith.constant 0 : index
    %2 = vector.load %arg4[%c0_3, %c0_4] : memref<1x256xf32, #tpu.memory_space<vmem>>, vector<1x256xf32>
    %cst = arith.constant 0.000000e+00 : f32
    %3 = vector.broadcast %cst : f32 to vector<2x256xf32>
    %4 = arith.maximumf %0, %3 : vector<2x256xf32>
    %5 = arith.mulf %0, %1 : vector<2x256xf32>
    %6 = arith.subf %4, %5 : vector<2x256xf32>
    %7 = math.absf %0 : vector<2x256xf32>
    %cst_5 = arith.constant 0.000000e+00 : f32
    %8 = vector.broadcast %cst_5 : f32 to vector<2x256xf32>
    %9 = arith.subf %8, %7 : vector<2x256xf32>
    %10 = math.exp %9 : vector<2x256xf32>
    %11 = math.log1p %10 : vector<2x256xf32>
    %12 = arith.addf %6, %11 : vector<2x256xf32>
    %13 = vector.broadcast %2 : vector<1x256xf32> to vector<2x256xf32>
    %14 = arith.mulf %12, %13 : vector<2x256xf32>
    %15 = vector.shape_cast %14 : vector<2x256xf32> to vector<1x2x256xf32>
    %cst_6 = arith.constant dense<0.000000e+00> : vector<1xf32>
    %16 = vector.multi_reduction <add>, %15, %cst_6 [1, 2] : vector<1x2x256xf32> to vector<1xf32>
    %17 = vector.shape_cast %16 : vector<1xf32> to vector<1x1x1xf32>
    %18 = vector.extract %17[0, 0, 0] : f32 from vector<1x1x1xf32>
    %c0_7 = arith.constant 0 : index
    %c0_8 = arith.constant 0 : index
    %19 = memref.load %arg5[%c0_7, %c0_8] : memref<1x1xf32, #tpu.memory_space<smem>>
    memref.store %18, %arg5[%c0_7, %c0_8] : memref<1x1xf32, #tpu.memory_space<smem>>
    return
  }
  func.func @transform_0(%arg0: i32, %arg1: i32) -> (i32, i32) {
    %c0_i32 = arith.constant 0 : i32
    return %arg1, %arg0 : i32, i32
  }
  func.func @transform_1(%arg0: i32, %arg1: i32) -> (i32, i32) {
    %c0_i32 = arith.constant 0 : i32
    return %arg1, %arg0 : i32, i32
  }
  func.func @transform_2(%arg0: i32, %arg1: i32) -> (i32, i32) {
    %c0_i32 = arith.constant 0 : i32
    %c0_i32_0 = arith.constant 0 : i32
    return %c0_i32, %arg0 : i32, i32
  }
  func.func @transform_3(%arg0: i32, %arg1: i32) -> (i32, i32) {
    %c0_i32 = arith.constant 0 : i32
    return %arg0, %arg1 : i32, i32
  }
}

</mosaic_0001>

<llo_original>
// kernel: tpu_custom_call.1
$region0: #{tpu_custom_call.1}
  #allocation0 [shape = 'u32[]', space=smem, size = 0x4, offset = 0x4, fixed_abs, tag = 'smem constant byte address 0x4 - core index']
  #allocation1 [shape = 'u32[144,128]{1,0:T(1,128)}', space=vmem, size = 0x12000, scoped, tag = 'internal scratch']
  %s0 = inlined_call_operand.hbm [shape: f32[2,256], index: 0, kind: input, shape index: {}]
  %s1 = inlined_call_operand.hbm [shape: f32[2,256], index: 1, kind: input, shape index: {}]
  %s2 = inlined_call_operand.vmem [shape: f32[1,256], index: 2, kind: input, shape index: {}]
  %s3 = inlined_call_operand.hbm [shape: f32[1,1], index: 3, kind: output, shape index: {}]
  %s4 = sld [smem:[#allocation0]]
  $region30: #{tpu_custom_call.1} parent=0
    _
  %s6 = ssub.s32 1, %s4
  %s7 = scalar_select 0, %s6, %s4
  $region1: #{tpu_custom_call.1} parent=0
    #allocation2 [shape = 'u8[2048]{0}', space=vmem, size = 0x800, scoped, tag = 'input window, operand 0, single buffered']
    #allocation3 [shape = 's32[1]{0}', space=sflag, size = 0x4, scoped, tag = 'scoped memory for tpu_custom_call.1']
    #allocation4 [shape = 's32[1]{0}', space=sflag, size = 0x4, scoped, tag = 'scoped memory for tpu_custom_call.1']
    #allocation5 [shape = 'u8[2048]{0}', space=vmem, size = 0x800, scoped, tag = 'input window, operand 1, single buffered']
    #allocation6 [shape = 's32[1]{0}', space=sflag, size = 0x4, scoped, tag = 'scoped memory for tpu_custom_call.1']
    #allocation7 [shape = 'u8[512]{0}', space=smem, size = 0x200, scoped, tag = 'output window, operand 0, single buffered']
    %8 = vsyncpa [#allocation3], 0
    %9 = vsyncpa [#allocation6], 0
    %10 = vsyncpa [#allocation4], 0
    // Predicated region
    $region2: #{tpu_custom_call.1} parent=1 // pred_check
      _
    $region3: #{tpu_custom_call.1} parent=1 // pred_check_branch
      %12 = sbr.rel (0) target = $region5
    $region4: #{tpu_custom_call.1} parent=1 // pred_region
      %s14 = ssub.s32 64, 64
      %15 = vsyncadd [#allocation3], %s14
      %s17 = sshll.u32 [#allocation2], 4
      %s18 = int_to_ptr.vmem [resolvable:$true] %s17
      %20 = dma.hbm_to_vmem [thread:$0]  %s0, 64, %s18, [#allocation3]
    $region5: #{tpu_custom_call.1} parent=1 // pred_fallthru
      _
    // Predicated region
    $region6: #{tpu_custom_call.1} parent=1 // pred_check
      _
    $region7: #{tpu_custom_call.1} parent=1 // pred_check_branch
      %22 = sbr.rel (0) target = $region9
    $region8: #{tpu_custom_call.1} parent=1 // pred_region
      %s24 = ssub.s32 64, 64
      %25 = vsyncadd [#allocation6], %s24
      %s27 = sshll.u32 [#allocation5], 4
      %s28 = int_to_ptr.vmem [resolvable:$true] %s27
      %30 = dma.hbm_to_vmem [thread:$0]  %s1, 64, %s28, [#allocation6]
    $region9: #{tpu_custom_call.1} parent=1 // pred_fallthru
      _
    // Predicated region
    $region10: #{tpu_custom_call.1} parent=1 // pred_check
      _
    $region11: #{tpu_custom_call.1} parent=1 // pred_check_branch
      %32 = sbr.rel (0) target = $region13
    $region12: #{tpu_custom_call.1} parent=1 // pred_region
      _
    $region13: #{tpu_custom_call.1} parent=1 // pred_fallthru
      _
    // Predicated region
    $region14: #{tpu_custom_call.1} parent=1 // pred_check
      _
    $region15: #{tpu_custom_call.1} parent=1 // pred_check_branch
      %34 = sbr.rel (0) target = $region17
    $region16: #{tpu_custom_call.1} parent=1 // pred_region
      %35 = dma.done [#allocation3], 64
    $region17: #{tpu_custom_call.1} parent=1 // pred_fallthru
      _
    // Predicated region
    $region18: #{tpu_custom_call.1} parent=1 // pred_check
      _
    $region19: #{tpu_custom_call.1} parent=1 // pred_check_branch
      %37 = sbr.rel (0) target = $region21
    $region20: #{tpu_custom_call.1} parent=1 // pred_region
      %38 = dma.done [#allocation6], 64
    $region21: #{tpu_custom_call.1} parent=1 // pred_fallthru
      _
    %v39 = vld [vmem:[#allocation2] sm:$0xf]
    %v40 = vld [vmem:[#allocation5] sm:$0xf]
    %v41 = vld [vmem:[%s2] sm:$0x3]
    %v42 = vmax.f32 %v39, 0.0
    %v43 = vmul.f32 %v39, %v40
    %v44 = vsub.f32 %v42, %v43
    %v45 = vand.u32 2147483647, %v39
    %v46 = vsub.f32 0.0, %v45
    %v47 = vmul.f32 %v46, 1.442695
    %v48 = vpow.pop %v47
    %v49 = vadd.f32 %v48, 1.0
    %v50 = vlog2.pop %v49
    %v51 = vmul.f32 %v50, 0.6931472
    %v52 = vmul.f32 -0.5, %v48
    %v53 = vadd.f32 %v52, 1.0
    %v54 = vmul.f32 %v53, %v48
    %v55 = vand.u32 2147483647, %v48
    %vm56 = vcmp.lt.f32.partialorder %v55, 0.0004427343
    %v57 = vsel %vm56, %v54, %v51
    %v58 = vadd.f32 %v44, %v57
    %v60 = vlaneseq
    %v61 = vshrl.u32 %v60, 7
    %v62 = vsub.s32 0, %v61
    %v63 = vrot.slane %v41, %v62
    %v64 = vlaneseq
    %v65 = vshrl.u32 %v64, 7
    %v66 = vsub.s32 1, %v65
    %v67 = vrot.slane %v41, %v66
    %v68 = vcombine.low %v63, %v67
    %v70 = vunpack.c.l.s4 1983009808
    %v71 = vunpack.c.0.s8 %v70
    %v72 = vlaneseq
    %v73 = vshrl.u32 %v72, 7
    %v74 = vsub.s32 %v71, %v73
    %v75 = vrot.slane %v68, %v74
    %v77 = vmul.f32 %v58, %v75
    %v80 = vunpack.c.l.s4 1983009808
    %v81 = vunpack.c.0.s8 %v80
    %v82 = vlaneseq
    %v83 = vshrl.u32 %v82, 7
    %v84 = vsub.s32 %v81, %v83
    %v85 = vrot.slane %v77, %v84
    %v86 = vcombine.high %v85, %v85
    %vm89 = vcmask 1041408
    %v90 = vsel %vm89, %v85, 0.0
    %v91 = vsel %vm89, %v86, 0.0
    %v92 = vadd.f32 %v90, %v91
    %93 = vadd.xlane.f32.xlu0 %v92
    %v94 = vpop.xlane.xlu0 %93
    %v95 = vrot.slane %v94, 4
    %v96 = vadd.f32 %v94, %v95
    %v97 = vrot.slane %v96, 2
    %v98 = vadd.f32 %v96, %v97
    %v99 = vrot.slane %v98, 1
    %v100 = vadd.f32 %v98, %v99
    %s101 = vtos %v100
    %s102 = scalar_lea.smem [#allocation7], 0
    %103 = sst [smem:[%s102]] %s101
    // Predicated region
    $region22: #{tpu_custom_call.1} parent=1 // pred_check
      _
    $region23: #{tpu_custom_call.1} parent=1 // pred_check_branch
      %105 = sbr.rel (0) target = $region25
    $region24: #{tpu_custom_call.1} parent=1 // pred_region
      %s107 = ssub.s32 16, 16
      %108 = vsyncadd [#allocation4], %s107
      %111 = dma.smem_to_hbm [#allocation7], 16, %s3, [#allocation4]
    $region25: #{tpu_custom_call.1} parent=1 // pred_fallthru
      _
    // Predicated region
    $region26: #{tpu_custom_call.1} parent=1 // pred_check
      _
    $region27: #{tpu_custom_call.1} parent=1 // pred_check_branch
      %113 = sbr.rel (0) target = $region29
    $region28: #{tpu_custom_call.1} parent=1 // pred_region
      %114 = dma.done [#allocation4], 16
    $region29: #{tpu_custom_call.1} parent=1 // pred_fallthru
      _
    %115 = sfence
    %116 = vsyncpa [#allocation3], 1
    %117 = vsyncpa [#allocation6], 1
    %118 = vsyncpa [#allocation4], 1

</llo_original>
